<compile_context>
chip_gen: v7x
topology: tpu7x:2x2x1
jax: 0.10.0
libtpu: 0.0.40
codegen_flags: <defaults>
</compile_context>

<pallas_src>
import functools

import jax
import jax.numpy as jnp
from jax.experimental import pallas as pl
from jax.experimental.pallas import tpu as pltpu


# ---------------------------------------------------------------------------
# Helpers
# ---------------------------------------------------------------------------

def _cdiv(a, b):
    return (a + b - 1) // b


def _round_up(x, m):
    return _cdiv(x, m) * m


def _round_down(x, m):
    return (x // m) * m


# Conservative cross-generation tile-plan budget.  v5e/v6e have 128 MiB
# physical VMEM, v7x has 64 MiB; default scoped limits are 16/32/32 MiB.
# We size the working set against ~24 MiB and request a 32 MiB scoped limit.
_VMEM_TILE_BUDGET = 24 * 1024 * 1024
_VMEM_LIMIT_BYTES = 32 * 1024 * 1024
_MAX_TB = 512


# ---------------------------------------------------------------------------
# Kernels
# ---------------------------------------------------------------------------

def _certs_resident_kernel(feat_ref, cert_ref, bias_ref, out_ref, *,
                           inv_k, compute_dtype):
    """Certificates resident in VMEM; one grid step per batch tile.

    out = mean_j ((feat @ certs - mean @ certs)_j ^ 2)
    """
    x = feat_ref[...].astype(compute_dtype)
    proj = jnp.dot(x, cert_ref[...], preferred_element_type=jnp.float32)
    proj = proj - bias_ref[...]                                   # (tb, Kp) f32
    out_ref[...] = (jnp.sum(proj * proj, axis=1, keepdims=True)
                    * inv_k).astype(out_ref.dtype)


def _certs_streamed_kernel(feat_ref, cert_ref, bias_ref, out_ref, acc_ref, *,
                           inv_k, compute_dtype):
    """Fallback when D*Kp does not fit VMEM: K tiled as a reduction axis."""
    kj = pl.program_id(1)

    @pl.when(kj == 0)
    def _init():
        acc_ref[...] = jnp.zeros_like(acc_ref)

    x = feat_ref[...].astype(compute_dtype)
    proj = jnp.dot(x, cert_ref[...], preferred_element_type=jnp.float32)
    proj = proj - bias_ref[...]                                   # (tb, tk) f32
    p2 = proj * proj
    # Per-lane partial sums into a (tb, 128) accumulator; the cross-lane
    # reduce happens once in the finalize branch instead of every K step.
    tk = p2.shape[1]
    partial = p2[:, 0:128]
    for c in range(1, tk // 128):
        partial = partial + p2[:, c * 128:(c + 1) * 128]
    acc_ref[...] += partial

    @pl.when(kj == pl.num_programs(1) - 1)
    def _finalize():
        out_ref[...] = (jnp.sum(acc_ref[...], axis=1, keepdims=True)
                        * inv_k).astype(out_ref.dtype)


# ---------------------------------------------------------------------------
# Module mirrors
# ---------------------------------------------------------------------------

class Uncertainty:
    """Mirror of the abstract PyTorch base class (interface only)."""

    def __init__(self):
        pass

    def fit(self, features, logits, targets):
        pass

    def forward(self, features, logits):
        raise NotImplementedError

    def __call__(self, features, logits):
        return self.forward(features, logits)


class Certificates(Uncertainty):
    """JAX/Pallas mirror of the PyTorch `Certificates` module.

    compute_dtype: dtype fed to the MXU (certificates are stored in it,
    features are cast in-kernel).  None -> feature dtype (exact parity with
    the PyTorch module); jnp.bfloat16 uses the fast MXU path and halves
    certificate HBM/VMEM bytes, with f32 accumulation.
    """

    def __init__(self, k=500, compute_dtype=None):
        super().__init__()
        self.k = k
        self.compute_dtype = compute_dtype
        self.mean = None
        self.certificates = None
        self._certs_dev = None     # (D, Kp): K zero-padded to 128, storage dtype
        self._bias = None          # (1, Kp) f32: mean @ padded certificates
        self._true_k = None

    def fit(self, features, logits, targets):
        # TODO(synk): SVD has no Pallas primitive — fit stays in plain JAX/XLA.
        features = jnp.asarray(features)
        self.mean = jnp.mean(features, axis=0, keepdims=True)               # (1, D)
        _, _, vt = jnp.linalg.svd(features - self.mean, full_matrices=True)
        self.certificates = vt[:, -self.k:]                                 # (D, K)
        self._prepare()

    def _prepare(self):
        _, k = self.certificates.shape
        self._true_k = k
        kp = max(128, _round_up(k, 128))                    # lane-align K
        store_dtype = self.compute_dtype or self.certificates.dtype
        certs = jnp.pad(self.certificates, ((0, 0), (0, kp - k)))  # zero cols
        self._certs_dev = certs.astype(store_dtype)
        # Fold the mean into a bias: (x - mean) @ C == x @ C - mean @ C.
        # Padded columns give a zero bias, so they contribute exactly 0.
        self._bias = jnp.dot(self.mean.astype(jnp.float32),
                             self._certs_dev.astype(jnp.float32))           # (1, Kp)

    def forward(self, features, logits):
        # `logits` is never used by forward, so it is not passed to the kernel
        # (no wasted HBM->VMEM DMA).
        assert self._certs_dev is not None, "call fit() first"
        features = jnp.asarray(features)
        b, d = features.shape
        dk, kp = self._certs_dev.shape
        assert d == dk, "certificates must match the feature dimension"

        feat_isize = features.dtype.itemsize
        cert_isize = self._certs_dev.dtype.itemsize
        cdtype = self.compute_dtype or features.dtype
        inv_k = 1.0 / float(self._true_k)

        # Residency decision: keep the whole certificate matrix in VMEM when it
        # (conservatively double-buffered) plus a minimal feature tile fits.
        resident_cert_bytes = 2 * d * kp * cert_isize
        min_feat_bytes = 2 * 8 * d * feat_isize
        use_resident = resident_cert_bytes + min_feat_bytes <= _VMEM_TILE_BUDGET

        if use_resident:
            feat_budget = _VMEM_TILE_BUDGET - resident_cert_bytes
            tk = kp
        else:
            tk = min(512, kp)
            while kp % tk:
                tk -= 128
            feat_budget = _VMEM_TILE_BUDGET - 3 * d * tk * cert_isize

        # --- batch tile ------------------------------------------------------
        tb = max(8, feat_budget // (2 * d * feat_isize))
        tb = min(tb, _MAX_TB, _round_up(b, 8))
        if tb >= 256:
            tb = _round_down(tb, 256)        # 256-aligned MXU passes (v6e/v7x)
        elif tb >= 128:
            tb = 128
        else:
            tb = max(8, _round_down(tb, 8))
        # Keep >= 2 batch tiles when possible so the "parallel" axis can be
        # sharded across v7x's two TensorCores.
        if b > 8 and _cdiv(b, tb) < 2:
            tb = max(8, _round_up(_cdiv(b, 2), 8))

        # Pad the batch so tb always divides it (no whole-array fallback tile
        # for awkward B); padded rows are sliced off the output.
        b_pad = _round_up(max(b, tb), tb)
        feats = features
        if b_pad != b:
            feats = jnp.pad(features, ((0, b_pad - b), (0, 0)))

        out_shape = jax.ShapeDtypeStruct((b_pad, 1), features.dtype)

        if use_resident:
            kernel = functools.partial(_certs_resident_kernel,
                                       inv_k=inv_k, compute_dtype=cdtype)
            out = pl.pallas_call(
                kernel,
                out_shape=out_shape,
                grid=(b_pad // tb,),
                in_specs=[
                    pl.BlockSpec((tb, d), lambda i: (i, 0)),   # features tile
                    pl.BlockSpec((d, kp), lambda i: (0, 0)),   # resident certs
                    pl.BlockSpec((1, kp), lambda i: (0, 0)),   # resident bias
                ],
                out_specs=pl.BlockSpec((tb, 1), lambda i: (i, 0)),
                compiler_params=pltpu.CompilerParams(
                    dimension_semantics=("parallel",),
                    vmem_limit_bytes=_VMEM_LIMIT_BYTES,
                ),
            )(feats, self._certs_dev, self._bias)
        else:
            kernel = functools.partial(_certs_streamed_kernel,
                                       inv_k=inv_k, compute_dtype=cdtype)
            out = pl.pallas_call(
                kernel,
                out_shape=out_shape,
                grid=(b_pad // tb, kp // tk),
                in_specs=[
                    pl.BlockSpec((tb, d), lambda i, j: (i, 0)),
                    pl.BlockSpec((d, tk), lambda i, j: (0, j),
                                 pipeline_mode=pl.Buffered(3)),
                    pl.BlockSpec((1, tk), lambda i, j: (0, j)),
                ],
                out_specs=pl.BlockSpec((tb, 1), lambda i, j: (i, 0)),
                scratch_shapes=[pltpu.VMEM((tb, 128), jnp.float32)],
                compiler_params=pltpu.CompilerParams(
                    dimension_semantics=("parallel", "arbitrary"),
                    vmem_limit_bytes=_VMEM_LIMIT_BYTES,
                ),
            )(feats, self._certs_dev, self._bias)

        return out[:b] if b_pad != b else out


if __name__ == "__main__":
    key = jax.random.PRNGKey(0)
    k_feat, k_logit, k_tgt = jax.random.split(key, 3)

    # Small, lane/sublane-friendly shapes consistent with the module.
    B, D, C = 16, 256, 10
    K = 128

    features = jax.random.normal(k_feat, (B, D), dtype=jnp.float32)
    logits = jax.random.normal(k_logit, (B, C), dtype=jnp.float32)
    targets = jax.random.randint(k_tgt, (B,), 0, C)

    # Pure-JAX reference of the forward pass.
    def reference(model, feats):
        return jnp.mean(jnp.square((feats - model.mean) @ model.certificates),
                        axis=1, keepdims=True)

    # 1) exact-dtype path (f32 MXU inputs — matches the PyTorch module).
    model = Certificates(k=K)
    model.fit(features, logits, targets)
    out = jax.block_until_ready(model(features, logits))
    assert out.shape == (B, 1)
    ref = reference(model, features)
    assert jnp.allclose(out, ref, atol=1e-4, rtol=1e-4), float(
        jnp.max(jnp.abs(out - ref)))

    # 2) bf16 MXU path with f32 accumulation (fast path on v5e/v6e/v7x);
    #    values are squared and averaged, so a loose tolerance is used.
    model_bf16 = Certificates(k=K, compute_dtype=jnp.bfloat16)
    model_bf16.fit(features, logits, targets)
    out_bf16 = jax.block_until_ready(model_bf16(features, logits))
    assert out_bf16.shape == (B, 1)
    assert jnp.allclose(out_bf16, ref, atol=5e-2, rtol=5e-2), float(
        jnp.max(jnp.abs(out_bf16 - ref)))

    print("KERNEL_OK")
</pallas_src>

<mosaic_0001>
module attributes {stable_mosaic.version = 11 : i64} {
  func.func @_certs_resident_kernel(%arg0: i32, %arg1: memref<8x256xf32, #tpu.memory_space<vmem>>, %arg2: memref<256x128xf32, #tpu.memory_space<vmem>>, %arg3: memref<1x128xf32, #tpu.memory_space<vmem>>, %arg4: memref<8x1xf32, #tpu.memory_space<vmem>>) attributes {dimension_semantics = [#tpu.dimension_semantics<parallel>], iteration_bounds = array<i64: 2>, scalar_prefetch = 0 : i64, scratch_operands = 0 : i64, tpu.core_type = #tpu.core_type<tc>, window_params = [{transform_indices = @transform_0, window_bounds = array<i64: 8, 256>}, {pipeline_mode = #tpu.pipeline_mode<synchronous>, transform_indices = @transform_1, window_bounds = array<i64: 256, 128>}, {pipeline_mode = #tpu.pipeline_mode<synchronous>, transform_indices = @transform_2, window_bounds = array<i64: 1, 128>}, {transform_indices = @transform_3, window_bounds = array<i64: 8, 1>}]} {
    %c0 = arith.constant 0 : index
    %c0_0 = arith.constant 0 : index
    %0 = vector.load %arg1[%c0, %c0_0] : memref<8x256xf32, #tpu.memory_space<vmem>>, vector<8x256xf32>
    %c0_1 = arith.constant 0 : index
    %c0_2 = arith.constant 0 : index
    %1 = vector.load %arg2[%c0_1, %c0_2] : memref<256x128xf32, #tpu.memory_space<vmem>>, vector<256x128xf32>
    %cst = arith.constant dense<0.000000e+00> : vector<8x128xf32>
    %2 = tpu.matmul %0, %1, %cst {dimension_numbers = #tpu.dot_dimension_numbers<[1], [0], [0], [1], [0, 0, 1, 1], [], []>} : vector<8x256xf32>, vector<256x128xf32>, vector<8x128xf32> -> vector<8x128xf32>
    %c0_3 = arith.constant 0 : index
    %c0_4 = arith.constant 0 : index
    %3 = vector.load %arg3[%c0_3, %c0_4] : memref<1x128xf32, #tpu.memory_space<vmem>>, vector<1x128xf32>
    %4 = vector.broadcast %3 : vector<1x128xf32> to vector<8x128xf32>
    %5 = arith.subf %2, %4 : vector<8x128xf32>
    %6 = arith.mulf %5, %5 : vector<8x128xf32>
    %cst_5 = arith.constant dense<0.000000e+00> : vector<8xf32>
    %7 = vector.multi_reduction <add>, %6, %cst_5 [1] : vector<8x128xf32> to vector<8xf32>
    %8 = vector.shape_cast %7 : vector<8xf32> to vector<8x1xf32>
    %cst_6 = arith.constant 7.812500e-03 : f32
    %9 = vector.broadcast %cst_6 : f32 to vector<8x1xf32>
    %10 = arith.mulf %8, %9 : vector<8x1xf32>
    %c0_7 = arith.constant 0 : index
    %c0_8 = arith.constant 0 : index
    %11 = vector.load %arg4[%c0_7, %c0_8] : memref<8x1xf32, #tpu.memory_space<vmem>>, vector<8x1xf32>
    tpu.vector_store %arg4[%c0_7, %c0_8], %10 {strides = array<i32>} : memref<8x1xf32, #tpu.memory_space<vmem>>, vector<8x1xf32>,
    return
  }
  func.func @transform_0(%arg0: i32) -> (i32, i32) {
    %c0_i32 = arith.constant 0 : i32
    %c0_i32_0 = arith.constant 0 : i32
    return %arg0, %c0_i32 : i32, i32
  }
  func.func @transform_1(%arg0: i32) -> (i32, i32) {
    %c0_i32 = arith.constant 0 : i32
    %c0_i32_0 = arith.constant 0 : i32
    %c0_i32_1 = arith.constant 0 : i32
    return %c0_i32, %c0_i32_0 : i32, i32
  }
  func.func @transform_2(%arg0: i32) -> (i32, i32) {
    %c0_i32 = arith.constant 0 : i32
    %c0_i32_0 = arith.constant 0 : i32
    %c0_i32_1 = arith.constant 0 : i32
    return %c0_i32, %c0_i32_0 : i32, i32
  }
  func.func @transform_3(%arg0: i32) -> (i32, i32) {
    %c0_i32 = arith.constant 0 : i32
    %c0_i32_0 = arith.constant 0 : i32
    return %arg0, %c0_i32 : i32, i32
  }
}

</mosaic_0001>

<llo_original>
// kernel: tpu_custom_call.1
$region0: #{tpu_custom_call.1}
  #allocation0 [shape = 'u32[]', space=smem, size = 0x4, offset = 0x4, fixed_abs, tag = 'smem constant byte address 0x4 - core index']
  #allocation1 [shape = 'u32[144,128]{1,0:T(1,128)}', space=vmem, size = 0x12000, scoped, tag = 'internal scratch']
  %s0 = inlined_call_operand.hbm [shape: f32[16,256], index: 0, kind: input, shape index: {}]
  %s1 = inlined_call_operand.hbm [shape: f32[256,128], index: 1, kind: input, shape index: {}]
  %s2 = inlined_call_operand.vmem [shape: f32[1,128], index: 2, kind: input, shape index: {}]
  %s3 = inlined_call_operand.vmem [shape: f32[16,1], index: 3, kind: output, shape index: {}]
  %s4 = sld [smem:[#allocation0]]
  $region53: #{tpu_custom_call.1} parent=0
    _
  %s6 = ssub.s32 1, %s4
  %s7 = scalar_select 0, %s6, %s4
  $region1: #{tpu_custom_call.1} parent=0
    #allocation2 [shape = 'u8[16384]{0}', space=vmem, size = 0x4000, scoped, tag = 'input window, operand 0']
    #allocation3 [shape = 's32[2]{0}', space=sflag, size = 0x8, scoped, tag = 'scoped memory for tpu_custom_call.1']
    #allocation4 [shape = 'u8[131072]{0}', space=vmem, size = 0x20000, scoped, tag = 'input window, operand 1, single buffered']
    #allocation5 [shape = 's32[1]{0}', space=sflag, size = 0x4, scoped, tag = 'scoped memory for tpu_custom_call.1']
    %8 = vsyncpa [#allocation3], 0
    %s9 = scalar_lea.sflag [#allocation3], 1
    %10 = vsyncpa %s9, 0
    %11 = vsyncpa [#allocation5], 0
    loop: start=0, step=1, limit=4
    $region2: #{tpu_custom_call.1} parent=1 // loop_pre_header
      _
    $region3: #{tpu_custom_call.1} parent=1 // loop_header
      %s13 = sphi 0, %s17
      %p14 = scmp.ge.s32.totalorder %s13, 4
      %s23 = sphi 0, %s25
      %s26 = sphi 0, %s23
      %s27 = sphi 0, %s26
      %s43 = sphi 0, %s27
      %s47 = sphi 0, %s47
      %s49 = sphi 0, %s47
      %s50 = sphi 0, %s49
      %s64 = sphi 0, %s50
      %s68 = sphi 0, %s68
      %s70 = sphi 0, %s68
      %s71 = sphi 0, %s70
      %s85 = sphi 0, %s71
      %s91 = sphi 0, %s93
      %s94 = sphi 0, %s91
      %s95 = sphi 0, %s94
      %s111 = sphi 0, %s95
    $region4: #{tpu_custom_call.1} parent=1 // loop_header_branch
      %16 = sbr.rel (%p14) target = $region8
    $region5: #{tpu_custom_call.1} parent=1 // loop_body
      %s18 = ssub.s32 %s13, 1
      %s19 = ssub.s32 %s13, 2
      %s20 = sadd.s32 %s13, 1
      %s21 = ssub.s32 %s13, %s20
      %p22 = scmp.eq.s32.totalorder %s21, 0
      %s24 = sadd.s32 %s23, 1
      %s25 = scalar_select %p22, %s23, %s24
      %p28 = pneg %p22
      %p29 = scmp.eq.s32.totalorder %s13, 1
      %p30 = por %p28, %p29
      %p31 = scmp.ne.s32.totalorder %s23, %s26
      %p32 = scmp.eq.s32.totalorder %s13, 0
      %p33 = por %p31, %p32
      %p34 = scmp.ne.s32.totalorder %s23, %s26
      %p35 = scmp.eq.s32.totalorder %s18, 1
      %p36 = por %p34, %p35
      %p37 = scmp.ne.s32.totalorder %s26, %s27
      %p38 = scmp.eq.s32.totalorder %s18, 0
      %p39 = por %p37, %p38
      %p40 = scmp.ne.s32.totalorder %s26, %s27
      %p41 = scmp.eq.s32.totalorder %s19, 1
      %p42 = por %p40, %p41
      %p44 = scmp.ne.s32.totalorder %s27, %s43
      %p45 = scmp.eq.s32.totalorder %s19, 0
      %p46 = por %p44, %p45
      %s48 = sadd.s32 %s47, 1
      %p51 = scmp.eq.s32.totalorder %s13, 1
      %p52 = scmp.ne.s32.totalorder %s47, %s49
      %p53 = scmp.eq.s32.totalorder %s13, 0
      %p54 = por %p52, %p53
      %p55 = scmp.ne.s32.totalorder %s47, %s49
      %p56 = scmp.eq.s32.totalorder %s18, 1
      %p57 = por %p55, %p56
      %p58 = scmp.ne.s32.totalorder %s49, %s50
      %p59 = scmp.eq.s32.totalorder %s18, 0
      %p60 = por %p58, %p59
      %p61 = scmp.ne.s32.totalorder %s49, %s50
      %p62 = scmp.eq.s32.totalorder %s19, 1
      %p63 = por %p61, %p62
      %p65 = scmp.ne.s32.totalorder %s50, %s64
      %p66 = scmp.eq.s32.totalorder %s19, 0
      %p67 = por %p65, %p66
      %s69 = sadd.s32 %s68, 1
      %p72 = scmp.eq.s32.totalorder %s13, 1
      %p73 = scmp.ne.s32.totalorder %s68, %s70
      %p74 = scmp.eq.s32.totalorder %s13, 0
      %p75 = por %p73, %p74
      %p76 = scmp.ne.s32.totalorder %s68, %s70
      %p77 = scmp.eq.s32.totalorder %s18, 1
      %p78 = por %p76, %p77
      %p79 = scmp.ne.s32.totalorder %s70, %s71
      %p80 = scmp.eq.s32.totalorder %s18, 0
      %p81 = por %p79, %p80
      %p82 = scmp.ne.s32.totalorder %s70, %s71
      %p83 = scmp.eq.s32.totalorder %s19, 1
      %p84 = por %p82, %p83
      %p86 = scmp.ne.s32.totalorder %s71, %s85
      %p87 = scmp.eq.s32.totalorder %s19, 0
      %p88 = por %p86, %p87
      %s89 = ssub.s32 %s13, %s20
      %p90 = scmp.eq.s32.totalorder %s89, 0
      %s92 = sadd.s32 %s91, 1
      %s93 = scalar_select %p90, %s91, %s92
      %p96 = pneg %p90
      %p97 = scmp.eq.s32.totalorder %s13, 1
      %p98 = por %p96, %p97
      %p99 = scmp.ne.s32.totalorder %s91, %s94
      %p100 = scmp.eq.s32.totalorder %s13, 0
      %p101 = por %p99, %p100
      %p102 = scmp.ne.s32.totalorder %s91, %s94
      %p103 = scmp.eq.s32.totalorder %s18, 1
      %p104 = por %p102, %p103
      %p105 = scmp.ne.s32.totalorder %s94, %s95
      %p106 = scmp.eq.s32.totalorder %s18, 0
      %p107 = por %p105, %p106
      %p108 = scmp.ne.s32.totalorder %s94, %s95
      %p109 = scmp.eq.s32.totalorder %s19, 1
      %p110 = por %p108, %p109
      %p112 = scmp.ne.s32.totalorder %s95, %s111
      %p113 = scmp.eq.s32.totalorder %s19, 0
      %p114 = por %p112, %p113
      %p115 = scmp.le.s32.totalorder 1, %s13
      %p116 = scmp.lt.s32.totalorder %s13, 3
      %p117 = pnand %p115, %p116
      %p118 = pneg %p117
      // Predicated region
      $region9: #{tpu_custom_call.1} parent=5 // pred_check
        _
      $region10: #{tpu_custom_call.1} parent=5 // pred_check_branch
        %120 = sbr.rel (%p117) target = $region12
      $region11: #{tpu_custom_call.1} parent=5 // pred_region
        %s121 = ssub.s32 %s13, 1
        // Predicated region
        $region13: #{tpu_custom_call.1} parent=11 // pred_check
          %p122 = pneg %p60
        $region14: #{tpu_custom_call.1} parent=11 // pred_check_branch
          %124 = sbr.rel (%p122) target = $region16
        $region15: #{tpu_custom_call.1} parent=11 // pred_region
          %s126 = ssub.s32 4096, 4096
          %127 = vsyncadd [#allocation5], %s126
          %s128 = sshll.u32 [#allocation4], 4
          %s129 = int_to_ptr.vmem [resolvable:$true] %s128
          %134 = dma.hbm_to_vmem [thread:$0]  %s1, 4096, %s129, [#allocation5], 128, 128, 8
        $region16: #{tpu_custom_call.1} parent=11 // pred_fallthru
          _
        // Predicated region
        $region17: #{tpu_custom_call.1} parent=11 // pred_check
          %p135 = pneg %p81
        $region18: #{tpu_custom_call.1} parent=11 // pred_check_branch
          %137 = sbr.rel (%p135) target = $region20
        $region19: #{tpu_custom_call.1} parent=11 // pred_region
          _
        $region20: #{tpu_custom_call.1} parent=11 // pred_fallthru
          _
      $region12: #{tpu_custom_call.1} parent=5 // pred_fallthru
        _
      %p138 = scmp.lt.s32.totalorder %s13, 2
      // Predicated region
      $region21: #{tpu_custom_call.1} parent=5 // pred_check
        %p139 = pneg %p138
      $region22: #{tpu_custom_call.1} parent=5 // pred_check_branch
        %141 = sbr.rel (%p139) target = $region24
      $region23: #{tpu_custom_call.1} parent=5 // pred_region
        // Predicated region
        $region25: #{tpu_custom_call.1} parent=23 // pred_check
          %p142 = pneg %p33
        $region26: #{tpu_custom_call.1} parent=23 // pred_check_branch
          %144 = sbr.rel (%p142) target = $region28
        $region27: #{tpu_custom_call.1} parent=23 // pred_region
          %s145 = sand.u32 %s23, 1
          %s146 = scalar_lea.sflag [#allocation3], %s145
          %s147 = sand.u32 %s23, 1
          %s148 = smul.addr %s147, 16
          %s149 = scalar_lea.vmem [#allocation2], %s148
          %s151 = ssub.s32 256, 256
          %152 = vsyncadd %s146, %s151
          %s153 = smul.addr %s13, 2
          %s154 = smul.addr %s153, 128
          %s155 = scalar_lea.hbm %s0, %s154
          %s157 = sshll.u32 %s149, 4
          %s158 = int_to_ptr.vmem [resolvable:$true] %s157
          %160 = dma.hbm_to_vmem [thread:$0]  %s155, 256, %s158, %s146
        $region28: #{tpu_custom_call.1} parent=23 // pred_fallthru
          _
      $region24: #{tpu_custom_call.1} parent=5 // pred_fallthru
        _
      %p161 = scmp.le.s32.totalorder 1, %s13
      %p162 = scmp.lt.s32.totalorder %s13, 3
      %p163 = pnand %p161, %p162
      %p164 = pneg %p163
      // Predicated region
      $region29: #{tpu_custom_call.1} parent=5 // pred_check
        _
      $region30: #{tpu_custom_call.1} parent=5 // pred_check_branch
        %166 = sbr.rel (%p163) target = $region32
      $region31: #{tpu_custom_call.1} parent=5 // pred_region
        %s167 = ssub.s32 %s13, 1
        %s168 = sand.u32 %s26, 1
        %s169 = scalar_lea.sflag [#allocation3], %s168
        %s170 = sand.u32 %s26, 1
        %s171 = smul.addr %s170, 16
        %s172 = scalar_lea.vmem [#allocation2], %s171
        // Predicated region
        $region33: #{tpu_custom_call.1} parent=31 // pred_check
          %p173 = pneg %p39
        $region34: #{tpu_custom_call.1} parent=31 // pred_check_branch
          %175 = sbr.rel (%p173) target = $region36
        $region35: #{tpu_custom_call.1} parent=31 // pred_region
          %176 = dma.done %s169, 256
        $region36: #{tpu_custom_call.1} parent=31 // pred_fallthru
          _
        // Predicated region
        $region37: #{tpu_custom_call.1} parent=31 // pred_check
          %p177 = pneg %p60
        $region38: #{tpu_custom_call.1} parent=31 // pred_check_branch
          %179 = sbr.rel (%p177) target = $region40
        $region39: #{tpu_custom_call.1} parent=31 // pred_region
          %180 = dma.done [#allocation5], 4096
        $region40: #{tpu_custom_call.1} parent=31 // pred_fallthru
          _
        %s181 = sand.u32 %s26, 1
        %s182 = scalar_lea.sflag [#allocation3], %s181
        %s183 = sand.u32 %s26, 1
        %s184 = smul.addr %s183, 16
        %s185 = scalar_lea.vmem [#allocation2], %s184
        %p186 = pneg %p39
        %p187 = pneg %p36
        %p188 = pneg %p60
        %p189 = pneg %p57
        %p190 = pneg %p81
        %p191 = pneg %p78
        %p192 = pneg %p107
        %p193 = pneg %p104
        %p194 = scmp.lt.s32.totalorder %s18, 1
        %s195 = scalar_select %p194, %s18, 1
        %s196 = smul.addr %s195, 8
        %s197 = scalar_lea.vmem %s3, %s196
        %p198 = scmp.lt.s32.totalorder %s18, 1
        %s199 = scalar_select %p198, %s18, 1
        %s200 = smul.addr %s199, 8
        %s201 = scalar_lea.vmem %s3, %s200
        %v202 = vld [vmem:[%s172] sm:$0xff]
        %v203 = vld [vmem:[%s172 + $0x8] sm:$0xff]
        %v204 = vld [vmem:[#allocation4] sm:$0xff]
        %v205 = vld [vmem:[#allocation4 + $0x8] sm:$0xff]
        %v206 = vld [vmem:[#allocation4 + $0x10] sm:$0xff]
        %v207 = vld [vmem:[#allocation4 + $0x18] sm:$0xff]
        %v208 = vld [vmem:[#allocation4 + $0x20] sm:$0xff]
        %v209 = vld [vmem:[#allocation4 + $0x28] sm:$0xff]
        %v210 = vld [vmem:[#allocation4 + $0x30] sm:$0xff]
        %v211 = vld [vmem:[#allocation4 + $0x38] sm:$0xff]
        %v212 = vld [vmem:[#allocation4 + $0x40] sm:$0xff]
        %v213 = vld [vmem:[#allocation4 + $0x48] sm:$0xff]
        %v214 = vld [vmem:[#allocation4 + $0x50] sm:$0xff]
        %v215 = vld [vmem:[#allocation4 + $0x58] sm:$0xff]
        %v216 = vld [vmem:[#allocation4 + $0x60] sm:$0xff]
        %v217 = vld [vmem:[#allocation4 + $0x68] sm:$0xff]
        %v218 = vld [vmem:[#allocation4 + $0x70] sm:$0xff]
        %v219 = vld [vmem:[#allocation4 + $0x78] sm:$0xff]
        %v220 = vld [vmem:[#allocation4 + $0x80] sm:$0xff]
        %v221 = vld [vmem:[#allocation4 + $0x88] sm:$0xff]
        %v222 = vld [vmem:[#allocation4 + $0x90] sm:$0xff]
        %v223 = vld [vmem:[#allocation4 + $0x98] sm:$0xff]
        %v224 = vld [vmem:[#allocation4 + $0xa0] sm:$0xff]
        %v225 = vld [vmem:[#allocation4 + $0xa8] sm:$0xff]
        %v226 = vld [vmem:[#allocation4 + $0xb0] sm:$0xff]
        %v227 = vld [vmem:[#allocation4 + $0xb8] sm:$0xff]
        %v228 = vld [vmem:[#allocation4 + $0xc0] sm:$0xff]
        %v229 = vld [vmem:[#allocation4 + $0xc8] sm:$0xff]
        %v230 = vld [vmem:[#allocation4 + $0xd0] sm:$0xff]
        %v231 = vld [vmem:[#allocation4 + $0xd8] sm:$0xff]
        %v232 = vld [vmem:[#allocation4 + $0xe0] sm:$0xff]
        %v233 = vld [vmem:[#allocation4 + $0xe8] sm:$0xff]
        %v234 = vld [vmem:[#allocation4 + $0xf0] sm:$0xff]
        %v235 = vld [vmem:[#allocation4 + $0xf8] sm:$0xff]
        %236 = vmatprep.subr.mxu0 0.0
        %237 = vmatpush1.msra.mxu0 %v204
        %238 = vmatprep.subr.mxu0 0.0
        %239 = vmatpush1.msra.mxu0 %v205
        %240 = vmatprep.subr.mxu0 0.0
        %241 = vmatpush1.msra.mxu0 %v206
        %242 = vmatprep.subr.mxu0 0.0
        %243 = vmatpush1.msra.mxu0 %v207
        %244 = vmatprep.subr.mxu0 0.0
        %245 = vmatpush1.msra.mxu0 %v208
        %246 = vmatprep.subr.mxu0 0.0
        %247 = vmatpush1.msra.mxu0 %v209
        %248 = vmatprep.subr.mxu0 0.0
        %249 = vmatpush1.msra.mxu0 %v210
        %250 = vmatprep.subr.mxu0 0.0
        %251 = vmatpush1.msra.mxu0 %v211
        %252 = vmatprep.subr.mxu0 0.0
        %253 = vmatpush1.msra.mxu0 %v212
        %254 = vmatprep.subr.mxu0 0.0
        %255 = vmatpush1.msra.mxu0 %v213
        %256 = vmatprep.subr.mxu0 0.0
        %257 = vmatpush1.msra.mxu0 %v214
        %258 = vmatprep.subr.mxu0 0.0
        %259 = vmatpush1.msra.mxu0 %v215
        %260 = vmatprep.subr.mxu0 0.0
        %261 = vmatpush1.msra.mxu0 %v216
        %262 = vmatprep.subr.mxu0 0.0
        %263 = vmatpush1.msra.mxu0 %v217
        %264 = vmatprep.subr.mxu0 0.0
        %265 = vmatpush1.msra.mxu0 %v218
        %266 = vmatprep.subr.mxu0 0.0
        %267 = vmatpush1.msra.mxu0 %v219
        %268 = vmatprep.subr.mxu0 0.0
        %269 = vmatpush1.msra.mxu0 %v220
        %270 = vmatprep.subr.mxu0 0.0
        %271 = vmatpush1.msra.mxu0 %v221
        %272 = vmatprep.subr.mxu0 0.0
        %273 = vmatpush1.msra.mxu0 %v222
        %274 = vmatprep.subr.mxu0 0.0
        %275 = vmatpush1.msra.mxu0 %v223
        %276 = vmatprep.subr.mxu0 0.0
        %277 = vmatpush1.msra.mxu0 %v224
        %278 = vmatprep.subr.mxu0 0.0
        %279 = vmatpush1.msra.mxu0 %v225
        %280 = vmatprep.subr.mxu0 0.0
        %281 = vmatpush1.msra.mxu0 %v226
        %282 = vmatprep.subr.mxu0 0.0
        %283 = vmatpush1.msra.mxu0 %v227
        %284 = vmatprep.subr.mxu0 0.0
        %285 = vmatpush1.msra.mxu0 %v228
        %286 = vmatprep.subr.mxu0 0.0
        %287 = vmatpush1.msra.mxu0 %v229
        %288 = vmatprep.subr.mxu0 0.0
        %289 = vmatpush1.msra.mxu0 %v230
        %290 = vmatprep.subr.mxu0 0.0
        %291 = vmatpush1.msra.mxu0 %v231
        %292 = vmatprep.subr.mxu0 0.0
        %293 = vmatpush1.msra.mxu0 %v232
        %294 = vmatprep.subr.mxu0 0.0
        %295 = vmatpush1.msra.mxu0 %v233
        %296 = vmatprep.subr.mxu0 0.0
        %297 = vmatpush1.msra.mxu0 %v234
        %298 = vmatprep.subr.mxu0 0.0
        %299 = vmatpush1.msra.mxu0 %v235
        %300 = vmatprep.mubr.f32.mxu0 %v203
        %301 = vmatmul.mubr.f32.gmra.mrb[0].mxu0 %v202
        %v302 = vpop.f32.mrb[0].mxu0
        %v303 = vadd.f32 0.0, %v302
        %v304 = vpop.f32.mrb[0].mxu0
        %305 = vdwg.mxu0
        %v306 = vld [vmem:[%s2] sm:$0x1]
        %v308 = vlaneseq
        %v309 = vshrl.u32 %v308, 7
        %v310 = vsub.s32 0, %v309
        %v311 = vrot.slane %v306, %v310
        %v313 = vsub.f32 %v303, %v311
        %v314 = vmul.f32 %v313, %v313
        %315 = vadd.xlane.f32.xlu0 %v314
        %v316 = vpop.xlane.xlu0 %315
        %v317 = vmul.f32 %v316, 0.0078125
        %vm318 = vcmask 7168
        %319 = vst.msk [vmem:[%s201] sm:$0xff] %vm318, %v317
        %p320 = scmp.lt.s32.totalorder %s18, 1
        %s321 = scalar_select %p320, %s18, 1
        %s322 = smul.addr %s321, 8
        %s323 = scalar_lea.vmem %s3, %s322
        // Predicated region
        $region41: #{tpu_custom_call.1} parent=31 // pred_check
          %p324 = pneg %p104
        $region42: #{tpu_custom_call.1} parent=31 // pred_check_branch
          %326 = sbr.rel (%p324) target = $region44
        $region43: #{tpu_custom_call.1} parent=31 // pred_region
          _
        $region44: #{tpu_custom_call.1} parent=31 // pred_fallthru
          _
      $region32: #{tpu_custom_call.1} parent=5 // pred_fallthru
        _
      %p327 = scmp.le.s32.totalorder 2, %s13
      // Predicated region
      $region45: #{tpu_custom_call.1} parent=5 // pred_check
        %p328 = pneg %p327
      $region46: #{tpu_custom_call.1} parent=5 // pred_check_branch
        %330 = sbr.rel (%p328) target = $region48
      $region47: #{tpu_custom_call.1} parent=5 // pred_region
        %s331 = ssub.s32 %s13, 2
        // Predicated region
        $region49: #{tpu_custom_call.1} parent=47 // pred_check
          %p332 = pneg %p110
        $region50: #{tpu_custom_call.1} parent=47 // pred_check_branch
          %334 = sbr.rel (%p332) target = $region52
        $region51: #{tpu_custom_call.1} parent=47 // pred_region
          %p335 = scmp.lt.s32.totalorder %s19, 1
          %s336 = scalar_select %p335, %s19, 1
          %s337 = smul.addr %s336, 8
          %s338 = scalar_lea.vmem %s3, %s337
        $region52: #{tpu_custom_call.1} parent=47 // pred_fallthru
          _
      $region48: #{tpu_custom_call.1} parent=5 // pred_fallthru
        _
    $region6: #{tpu_custom_call.1} parent=1 // loop_footer
      %s17 = sadd.s32 1, %s13
    $region7: #{tpu_custom_call.1} parent=1 // loop_footer_branch
      %12 = sbr.rel target = $region3
    $region8: #{tpu_custom_call.1} parent=1 // loop_exit
      _
    %339 = vsyncpa [#allocation3], 1
    %s340 = scalar_lea.sflag [#allocation3], 1
    %341 = vsyncpa %s340, 1
    %342 = vsyncpa [#allocation5], 1

</llo_original>
